<compile_context>
chip_gen: v7x
topology: tpu7x:2x2x1
jax: 0.10.0
libtpu: 0.0.40
codegen_flags: <defaults>
</compile_context>

<pallas_src>
import functools
import math

import jax
import jax.numpy as jnp
from jax.experimental import pallas as pl
from jax.experimental.pallas import tpu as pltpu


def _p2p_edge_conv_kernel(a_ref, inc_ref, ef_ref, w_ref, b_ref, o_ref, agg_ref,
                          *, d_feat, e_total, edge_tile, mask_tail):
    """One (batch-tile, edge-tile) grid step.

    a_ref  : [TB, N]    resident  (edge_nodes @ adj, bf16)
    inc_ref: [N, TE]    streamed  incidence tile (bf16, lane-dense)
    ef_ref : [TE, D+1]  streamed  edge features with an appended ones column
    w_ref  : [D, K]     resident
    b_ref  : [1, K]     resident
    o_ref  : [TB, K]    output (written once, at the last edge tile)
    agg_ref: [TB, D+1]  f32 scratch: [:, :D] = sum_e M*ef, [:, D] = row_sum
    """
    ei = pl.program_id(1)

    @pl.when(ei == 0)
    def _init():
        agg_ref[...] = jnp.zeros_like(agg_ref)

    # S[b, e] = A[b, :] @ inc[:, e].  Operands hold small integers (0..2),
    # exact in bf16; accumulation is f32, so the == 2.0 test is exact.
    s = jnp.dot(a_ref[...], inc_ref[...], preferred_element_type=jnp.float32)
    sel = s == 2.0
    ef = ef_ref[...]

    if mask_tail:
        # Tail tile: out-of-bounds block contents are undefined.  Zero the
        # selection mask for out-of-range columns AND the out-of-range
        # edge-feature rows (zeroing ef also prevents 0 * NaN from garbage
        # features and keeps the ones/count column from being inflated).
        col = jax.lax.broadcasted_iota(jnp.int32, s.shape, 1) + ei * edge_tile
        sel = jnp.logical_and(sel, col < e_total)
        row = jax.lax.broadcasted_iota(jnp.int32, ef.shape, 0) + ei * edge_tile
        ef = jnp.where(row < e_total, ef, jnp.zeros_like(ef))

    m = jnp.where(sel, 1.0, 0.0).astype(ef.dtype)          # [TB, TE] mask

    # Weight factored out of the e-reduction: aggregate raw edge features.
    # The last ef column is all ones, so agg[:, D] accumulates row_sum on the
    # MXU (no per-step cross-lane reduction, no [TB, 1] scratch store).
    agg_ref[...] += jnp.dot(m, ef, preferred_element_type=jnp.float32)

    @pl.when(ei == pl.num_programs(1) - 1)
    def _finish():
        agg = agg_ref[...]
        rs = agg[:, d_feat:]                                # [TB, 1] edge counts
        inv = jnp.where(rs == 0.0, 0.0, 1.0 / rs)           # 1/0 -> 0 (as in torch)
        gate = jnp.where(rs == 0.0, 0.0, 1.0)               # empty rows get no bias
        h = inv * jnp.dot(agg[:, :d_feat], w_ref[...],
                          preferred_element_type=jnp.float32)
        o_ref[...] = (h + gate * b_ref[...]).astype(o_ref.dtype)


def patch_to_patch_edge_convolution(edge_nodes, adj_matrix, inc_matrix,
                                    edge_feats, weight, bias, *,
                                    max_edge_tile=None):
    """Forward pass of PatchToPatchEdgeConvolution on dense inputs."""
    B, N = edge_nodes.shape
    N2, E = inc_matrix.shape
    D, K = weight.shape
    assert N2 == N and edge_feats.shape == (E, D) and bias.shape == (K,)
    dp1 = D + 1

    # Reduction-invariant glue (tiny): A = edge_nodes @ adj.  Values are small
    # integer counts, exact in bf16.  inc/adj are static graph structure in the
    # original module, so in steady state the bf16 incidence matrix is held
    # once by the caller and this cast amortises to zero.
    a = jnp.dot(edge_nodes, adj_matrix).astype(jnp.bfloat16)
    inc_bf16 = inc_matrix.astype(jnp.bfloat16)

    # Fold row_sum into the aggregation matmul: append a ones column so the
    # MXU accumulates the selected-edge count alongside the features.
    ef_aug = jnp.concatenate(
        [edge_feats, jnp.ones((E, 1), dtype=edge_feats.dtype)], axis=1)

    # ---- Tiling --------------------------------------------------------------
    # Single batch tile: no re-streaming of inc/ef.  (v7x megacore could use
    # exactly 2 batch tiles, one per TensorCore, when B is large.)
    tb = B

    inc_isz = jnp.dtype(inc_bf16.dtype).itemsize
    ef_isz = jnp.dtype(ef_aug.dtype).itemsize

    def footprint(te):
        streamed = 2 * (N * te * inc_isz + te * dp1 * ef_isz)     # double-buffered
        resident = 2 * (tb * N * 2 + D * K * 4 + K * 4 + tb * K * 4)
        scratch = tb * dp1 * 4
        temps = 2 * tb * te * 4                                   # s and m temporaries
        return streamed + resident + scratch + temps

    VMEM_BUDGET = 40 * 1024 * 1024            # v7x-safe (64 MiB physical VMEM)
    cap = max_edge_tile if max_edge_tile is not None else 4096
    te_cands = ([E] if E <= cap else [])
    te_cands += [t for t in (4096, 2048, 1024, 512, 256, 128) if t < E and t <= cap]
    if not te_cands:
        te_cands = [min(E, 128)]
    te = next((t for t in te_cands if footprint(t) <= VMEM_BUDGET), te_cands[-1])

    n_e = pl.cdiv(E, te)
    grid = (B // tb, n_e)                      # reduction (edge) axis last
    mask_tail = (E % te) != 0                  # tail handled in-kernel, no host pad

    vmem_limit = int(min(max(footprint(te) * 1.25, 32 * 1024 * 1024),
                         48 * 1024 * 1024))

    bias2d = bias.reshape(1, K)

    kernel = functools.partial(_p2p_edge_conv_kernel, d_feat=D, e_total=E,
                               edge_tile=te, mask_tail=mask_tail)

    out = pl.pallas_call(
        kernel,
        out_shape=jax.ShapeDtypeStruct((B, K), edge_feats.dtype),
        grid_spec=pltpu.PrefetchScalarGridSpec(
            num_scalar_prefetch=0,
            grid=grid,                                         # (batch tiles, edge tiles)
            in_specs=[
                pl.BlockSpec((tb, N), lambda bi, ei: (bi, 0)),     # A (resident, bf16)
                # If a profile still shows exposed DMA, add
                # pipeline_mode=pl.Buffered(3) to the two streamed specs below.
                pl.BlockSpec((N, te), lambda bi, ei: (0, ei)),     # incidence tile (bf16)
                pl.BlockSpec((te, dp1), lambda bi, ei: (ei, 0)),   # edge feats + ones col
                pl.BlockSpec((D, K), lambda bi, ei: (0, 0)),       # weight (resident)
                pl.BlockSpec((1, K), lambda bi, ei: (0, 0)),       # bias (resident)
            ],
            out_specs=pl.BlockSpec((tb, K), lambda bi, ei: (bi, 0)),
            scratch_shapes=[
                pltpu.VMEM((tb, dp1), jnp.float32),   # aggregated features + count
            ],
        ),
        compiler_params=pltpu.CompilerParams(
            dimension_semantics=("parallel", "arbitrary"),
            vmem_limit_bytes=vmem_limit),
    )(a, inc_bf16, ef_aug, weight, bias2d)
    return out


def _reference(edge_nodes, adj_matrix, inc_matrix, edge_feats, weight, bias):
    """Pure-JAX transcription of the PyTorch forward, for validation."""
    hp = jax.lax.Precision.HIGHEST
    s = jnp.dot(jnp.dot(edge_nodes, adj_matrix, precision=hp),
                inc_matrix, precision=hp)                  # [B, E]
    m = (s == 2.0).astype(jnp.float32)
    rs = jnp.sum(m, axis=1)
    inv = jnp.where(rs == 0.0, 0.0, 1.0 / rs)
    m_norm = m * inv[:, None]
    h_edges = jnp.dot(edge_feats, weight, precision=hp) + bias
    return jnp.dot(m_norm, h_edges, precision=hp)


if __name__ == "__main__":
    # Small deterministic graph: N nodes, E undirected edges, B query edges.
    B, N, E, D, K = 8, 64, 1000, 16, 32

    key = jax.random.PRNGKey(0)
    k_u, k_v, k_sel, k_ef, k_w, k_b = jax.random.split(key, 6)

    # Random edge list with u != v; dense incidence and adjacency from it.
    u = jax.random.randint(k_u, (E,), 0, N)
    v = (u + 1 + jax.random.randint(k_v, (E,), 0, N - 1)) % N
    e_idx = jnp.arange(E)
    inc_matrix = (jnp.zeros((N, E), jnp.float32)
                  .at[u, e_idx].set(1.0)
                  .at[v, e_idx].set(1.0))
    adj_matrix = (jnp.zeros((N, N), jnp.float32)
                  .at[u, v].set(1.0)
                  .at[v, u].set(1.0))

    # Each batch row is the 2-hot endpoint indicator of one graph edge; row 0 is
    # zeroed to exercise the empty-row (row_sum == 0 -> output 0) path.
    sel = jax.random.randint(k_sel, (B,), 0, E)
    b_idx = jnp.arange(B)
    edge_nodes = (jnp.zeros((B, N), jnp.float32)
                  .at[b_idx, u[sel]].set(1.0)
                  .at[b_idx, v[sel]].set(1.0)
                  .at[0, :].set(0.0))

    edge_feats = jax.random.normal(k_ef, (E, D), jnp.float32)

    # Parameter init mirrors reset_parameters(): uniform(-stdv, stdv), stdv = 1/sqrt(K).
    stdv = 1.0 / math.sqrt(K)
    weight = jax.random.uniform(k_w, (D, K), jnp.float32, minval=-stdv, maxval=stdv)
    bias = jax.random.uniform(k_b, (K,), jnp.float32, minval=-stdv, maxval=stdv)

    ref = _reference(edge_nodes, adj_matrix, inc_matrix, edge_feats, weight, bias)

    # Default path: whole edge axis in a single lane-dense tile (te = E).
    out = patch_to_patch_edge_convolution(
        edge_nodes, adj_matrix, inc_matrix, edge_feats, weight, bias)
    out = jax.block_until_ready(out)
    assert out.shape == (B, K)
    # Tolerance covers MXU default-precision matmuls vs the HIGHEST-precision
    # reference; structural errors would be orders of magnitude larger.
    assert jnp.allclose(out, ref, rtol=1e-3, atol=1e-3), (
        "Pallas output mismatch vs reference (single-tile path)")

    # Forced small edge tile: exercises the pl.cdiv grid + in-kernel tail mask.
    out_tiled = patch_to_patch_edge_convolution(
        edge_nodes, adj_matrix, inc_matrix, edge_feats, weight, bias,
        max_edge_tile=256)
    out_tiled = jax.block_until_ready(out_tiled)
    assert jnp.allclose(out_tiled, ref, rtol=1e-3, atol=1e-3), (
        "Pallas output mismatch vs reference (tiled/tail-mask path)")

    print("KERNEL_OK")
</pallas_src>

<mosaic_0001>
module attributes {stable_mosaic.version = 11 : i64} {
  func.func @_p2p_edge_conv_kernel(%arg0: i32, %arg1: i32, %arg2: memref<8x64xbf16, #tpu.memory_space<vmem>>, %arg3: memref<64x1000xbf16, #tpu.memory_space<vmem>>, %arg4: memref<1000x17xf32, #tpu.memory_space<vmem>>, %arg5: memref<16x32xf32, #tpu.memory_space<vmem>>, %arg6: memref<1x32xf32, #tpu.memory_space<vmem>>, %arg7: memref<8x32xf32, #tpu.memory_space<vmem>>, %arg8: memref<8x17xf32, #tpu.memory_space<vmem>>) attributes {dimension_semantics = [#tpu.dimension_semantics<parallel>, #tpu.dimension_semantics<arbitrary>], iteration_bounds = array<i64: 1, 1>, scalar_prefetch = 0 : i64, scratch_operands = 1 : i64, tpu.core_type = #tpu.core_type<tc>, window_params = [{transform_indices = @transform_0, window_bounds = array<i64: 8, 64>}, {transform_indices = @transform_1, window_bounds = array<i64: 64, 1000>}, {transform_indices = @transform_2, window_bounds = array<i64: 1000, 17>}, {pipeline_mode = #tpu.pipeline_mode<synchronous>, transform_indices = @transform_3, window_bounds = array<i64: 16, 32>}, {pipeline_mode = #tpu.pipeline_mode<synchronous>, transform_indices = @transform_4, window_bounds = array<i64: 1, 32>}, {transform_indices = @transform_5, window_bounds = array<i64: 8, 32>}]} {
    %c0_i32 = arith.constant 0 : i32
    %0 = arith.cmpi eq, %arg1, %c0_i32 : i32
    %1 = arith.extui %0 : i1 to i32
    %c0_i32_0 = arith.constant 0 : i32
    %2 = arith.cmpi ne, %1, %c0_i32_0 : i32
    scf.if %2 {
      %cst_16 = arith.constant 0.000000e+00 : f32
      %19 = vector.broadcast %cst_16 : f32 to vector<8x17xf32>
      %c0_17 = arith.constant 0 : index
      %c0_18 = arith.constant 0 : index
      %20 = vector.load %arg8[%c0_17, %c0_18] : memref<8x17xf32, #tpu.memory_space<vmem>>, vector<8x17xf32>
      tpu.vector_store %arg8[%c0_17, %c0_18], %19 {strides = array<i32>} : memref<8x17xf32, #tpu.memory_space<vmem>>, vector<8x17xf32>,
    } else {
    }
    %c0 = arith.constant 0 : index
    %c0_1 = arith.constant 0 : index
    %3 = vector.load %arg2[%c0, %c0_1] : memref<8x64xbf16, #tpu.memory_space<vmem>>, vector<8x64xbf16>
    %c0_2 = arith.constant 0 : index
    %c0_3 = arith.constant 0 : index
    %4 = vector.load %arg3[%c0_2, %c0_3] : memref<64x1000xbf16, #tpu.memory_space<vmem>>, vector<64x1000xbf16>
    %cst = arith.constant dense<0.000000e+00> : vector<8x1000xf32>
    %5 = tpu.matmul %3, %4, %cst {dimension_numbers = #tpu.dot_dimension_numbers<[1], [0], [0], [1], [0, 0, 1, 1], [], []>} : vector<8x64xbf16>, vector<64x1000xbf16>, vector<8x1000xf32> -> vector<8x1000xf32>
    %cst_4 = arith.constant 2.000000e+00 : f32
    %6 = vector.broadcast %cst_4 : f32 to vector<8x1000xf32>
    %7 = arith.cmpf oeq, %5, %6 : vector<8x1000xf32>
    %c0_5 = arith.constant 0 : index
    %c0_6 = arith.constant 0 : index
    %8 = vector.load %arg4[%c0_5, %c0_6] : memref<1000x17xf32, #tpu.memory_space<vmem>>, vector<1000x17xf32>
    %cst_7 = arith.constant 1.000000e+00 : f32
    %cst_8 = arith.constant 0.000000e+00 : f32
    %9 = vector.broadcast %cst_7 : f32 to vector<8x1000xf32>
    %10 = vector.broadcast %cst_8 : f32 to vector<8x1000xf32>
    %11 = arith.select %7, %9, %10 : vector<8x1000xi1>, vector<8x1000xf32>
    %c0_9 = arith.constant 0 : index
    %c0_10 = arith.constant 0 : index
    %12 = vector.load %arg8[%c0_9, %c0_10] : memref<8x17xf32, #tpu.memory_space<vmem>>, vector<8x17xf32>
    %cst_11 = arith.constant dense<0.000000e+00> : vector<8x17xf32>
    %13 = tpu.matmul %11, %8, %cst_11 {dimension_numbers = #tpu.dot_dimension_numbers<[1], [0], [0], [1], [0, 0, 1, 1], [], []>} : vector<8x1000xf32>, vector<1000x17xf32>, vector<8x17xf32> -> vector<8x17xf32>
    %14 = arith.addf %12, %13 : vector<8x17xf32>
    %c0_12 = arith.constant 0 : index
    %c0_13 = arith.constant 0 : index
    %15 = vector.load %arg8[%c0_12, %c0_13] : memref<8x17xf32, #tpu.memory_space<vmem>>, vector<8x17xf32>
    tpu.vector_store %arg8[%c0_12, %c0_13], %14 {strides = array<i32>} : memref<8x17xf32, #tpu.memory_space<vmem>>, vector<8x17xf32>,
    %c0_i32_14 = arith.constant 0 : i32
    %16 = arith.cmpi eq, %arg1, %c0_i32_14 : i32
    %17 = arith.extui %16 : i1 to i32
    %c0_i32_15 = arith.constant 0 : i32
    %18 = arith.cmpi ne, %17, %c0_i32_15 : i32
    scf.if %18 {
      %c0_16 = arith.constant 0 : index
      %c0_17 = arith.constant 0 : index
      %19 = vector.load %arg8[%c0_16, %c0_17] : memref<8x17xf32, #tpu.memory_space<vmem>>, vector<8x17xf32>
      %20 = vector.extract_strided_slice %19 {offsets = [0, 16], sizes = [8, 1], strides = [1, 1]} : vector<8x17xf32> to vector<8x1xf32>
      %cst_18 = arith.constant 0.000000e+00 : f32
      %21 = vector.broadcast %cst_18 : f32 to vector<8x1xf32>
      %22 = arith.cmpf oeq, %20, %21 : vector<8x1xf32>
      %cst_19 = arith.constant 1.000000e+00 : f32
      %23 = vector.broadcast %cst_19 : f32 to vector<8x1xf32>
      %24 = arith.divf %23, %20 : vector<8x1xf32>
      %cst_20 = arith.constant 0.000000e+00 : f32
      %25 = vector.broadcast %cst_20 : f32 to vector<8x1xf32>
      %26 = arith.select %22, %25, %24 : vector<8x1xi1>, vector<8x1xf32>
      %cst_21 = arith.constant 0.000000e+00 : f32
      %27 = vector.broadcast %cst_21 : f32 to vector<8x1xf32>
      %28 = arith.cmpf oeq, %20, %27 : vector<8x1xf32>
      %cst_22 = arith.constant 0.000000e+00 : f32
      %cst_23 = arith.constant 1.000000e+00 : f32
      %29 = vector.broadcast %cst_22 : f32 to vector<8x1xf32>
      %30 = vector.broadcast %cst_23 : f32 to vector<8x1xf32>
      %31 = arith.select %28, %29, %30 : vector<8x1xi1>, vector<8x1xf32>
      %32 = vector.extract_strided_slice %19 {offsets = [0, 0], sizes = [8, 16], strides = [1, 1]} : vector<8x17xf32> to vector<8x16xf32>
      %c0_24 = arith.constant 0 : index
      %c0_25 = arith.constant 0 : index
      %33 = vector.load %arg5[%c0_24, %c0_25] : memref<16x32xf32, #tpu.memory_space<vmem>>, vector<16x32xf32>
      %cst_26 = arith.constant dense<0.000000e+00> : vector<8x32xf32>
      %34 = tpu.matmul %32, %33, %cst_26 {dimension_numbers = #tpu.dot_dimension_numbers<[1], [0], [0], [1], [0, 0, 1, 1], [], []>} : vector<8x16xf32>, vector<16x32xf32>, vector<8x32xf32> -> vector<8x32xf32>
      %35 = vector.broadcast %26 : vector<8x1xf32> to vector<8x32xf32>
      %36 = arith.mulf %35, %34 : vector<8x32xf32>
      %c0_27 = arith.constant 0 : index
      %c0_28 = arith.constant 0 : index
      %37 = vector.load %arg6[%c0_27, %c0_28] : memref<1x32xf32, #tpu.memory_space<vmem>>, vector<1x32xf32>
      %38 = vector.broadcast %31 : vector<8x1xf32> to vector<8x32xf32>
      %39 = vector.broadcast %37 : vector<1x32xf32> to vector<8x32xf32>
      %40 = arith.mulf %38, %39 : vector<8x32xf32>
      %41 = arith.addf %36, %40 : vector<8x32xf32>
      %c0_29 = arith.constant 0 : index
      %c0_30 = arith.constant 0 : index
      %42 = vector.load %arg7[%c0_29, %c0_30] : memref<8x32xf32, #tpu.memory_space<vmem>>, vector<8x32xf32>
      tpu.vector_store %arg7[%c0_29, %c0_30], %41 {strides = array<i32>} : memref<8x32xf32, #tpu.memory_space<vmem>>, vector<8x32xf32>,
    } else {
    }
    return
  }
  func.func @transform_0(%arg0: i32, %arg1: i32) -> (i32, i32) {
    %c0_i32 = arith.constant 0 : i32
    %c0_i32_0 = arith.constant 0 : i32
    return %arg0, %c0_i32 : i32, i32
  }
  func.func @transform_1(%arg0: i32, %arg1: i32) -> (i32, i32) {
    %c0_i32 = arith.constant 0 : i32
    %c0_i32_0 = arith.constant 0 : i32
    return %c0_i32, %arg1 : i32, i32
  }
  func.func @transform_2(%arg0: i32, %arg1: i32) -> (i32, i32) {
    %c0_i32 = arith.constant 0 : i32
    %c0_i32_0 = arith.constant 0 : i32
    return %arg1, %c0_i32 : i32, i32
  }
  func.func @transform_3(%arg0: i32, %arg1: i32) -> (i32, i32) {
    %c0_i32 = arith.constant 0 : i32
    %c0_i32_0 = arith.constant 0 : i32
    %c0_i32_1 = arith.constant 0 : i32
    return %c0_i32, %c0_i32_0 : i32, i32
  }
  func.func @transform_4(%arg0: i32, %arg1: i32) -> (i32, i32) {
    %c0_i32 = arith.constant 0 : i32
    %c0_i32_0 = arith.constant 0 : i32
    %c0_i32_1 = arith.constant 0 : i32
    return %c0_i32, %c0_i32_0 : i32, i32
  }
  func.func @transform_5(%arg0: i32, %arg1: i32) -> (i32, i32) {
    %c0_i32 = arith.constant 0 : i32
    %c0_i32_0 = arith.constant 0 : i32
    return %arg0, %c0_i32 : i32, i32
  }
}

</mosaic_0001>

<llo_original>
// kernel: tpu_custom_call.1
$region0: #{tpu_custom_call.1}
  #allocation0 [shape = 'u32[]', space=smem, size = 0x4, offset = 0x4, fixed_abs, tag = 'smem constant byte address 0x4 - core index']
  #allocation1 [shape = 'u32[144,128]{1,0:T(1,128)}', space=vmem, size = 0x12000, scoped, tag = 'internal scratch']
  #allocation2 [shape = 'f32[8,17]{1,0:T(8,128)}', space=vmem, size = 0x1000, scoped, tag = 'scratch operand']
  %s0 = inlined_call_operand.vmem [shape: bf16[8,64], index: 0, kind: input, shape index: {}]
  %s1 = inlined_call_operand.vmem [shape: bf16[64,1000], index: 1, kind: input, shape index: {}]
  %s2 = inlined_call_operand.vmem [shape: f32[1000,17], index: 2, kind: input, shape index: {}]
  %s3 = inlined_call_operand.vmem [shape: f32[16,32], index: 3, kind: input, shape index: {}]
  %s4 = inlined_call_operand.vmem [shape: f32[1,32], index: 4, kind: input, shape index: {}]
  %s5 = inlined_call_operand.hbm [shape: f32[8,32], index: 5, kind: output, shape index: {}]
  %s6 = sld [smem:[#allocation0]]
  $region38: #{tpu_custom_call.1} parent=0
    _
  %s8 = ssub.s32 1, %s6
  %s9 = scalar_select 0, %s8, %s6
  $region1: #{tpu_custom_call.1} parent=0
    #allocation3 [shape = 'u8[4096]{0}', space=vmem, size = 0x1000, scoped, tag = 'output window, operand 0, single buffered']
    #allocation4 [shape = 's32[1]{0}', space=sflag, size = 0x4, scoped, tag = 'scoped memory for tpu_custom_call.1']
    %10 = vsyncpa [#allocation4], 0
    // Predicated region
    $region2: #{tpu_custom_call.1} parent=1 // pred_check
      _
    $region3: #{tpu_custom_call.1} parent=1 // pred_check_branch
      %12 = sbr.rel (0) target = $region5
    $region4: #{tpu_custom_call.1} parent=1 // pred_region
      _
    $region5: #{tpu_custom_call.1} parent=1 // pred_fallthru
      _
    // Predicated region
    $region6: #{tpu_custom_call.1} parent=1 // pred_check
      _
    $region7: #{tpu_custom_call.1} parent=1 // pred_check_branch
      %14 = sbr.rel (0) target = $region9
    $region8: #{tpu_custom_call.1} parent=1 // pred_region
      _
    $region9: #{tpu_custom_call.1} parent=1 // pred_fallthru
      _
    // Predicated region
    $region10: #{tpu_custom_call.1} parent=1 // pred_check
      _
    $region11: #{tpu_custom_call.1} parent=1 // pred_check_branch
      %16 = sbr.rel (0) target = $region13
    $region12: #{tpu_custom_call.1} parent=1 // pred_region
      _
    $region13: #{tpu_custom_call.1} parent=1 // pred_fallthru
      _
    // Predicated region
    $region14: #{tpu_custom_call.1} parent=1 // pred_check
      _
    $region15: #{tpu_custom_call.1} parent=1 // pred_check_branch
      %18 = sbr.rel (0) target = $region17
    $region16: #{tpu_custom_call.1} parent=1 // pred_region
      _
    $region17: #{tpu_custom_call.1} parent=1 // pred_fallthru
      _
    // Predicated region
    $region18: #{tpu_custom_call.1} parent=1 // pred_check
      _
    $region19: #{tpu_custom_call.1} parent=1 // pred_check_branch
      %20 = sbr.rel (0) target = $region21
    $region20: #{tpu_custom_call.1} parent=1 // pred_region
      _
    $region21: #{tpu_custom_call.1} parent=1 // pred_fallthru
      _
    %p22 = scmp.eq.s32.totalorder 0, 0
    // Predicated region
    $region22: #{tpu_custom_call.1} parent=1 // pred_check
      %p23 = pneg %p22
    $region23: #{tpu_custom_call.1} parent=1 // pred_check_branch
      %25 = sbr.rel (%p23) target = $region25
    $region24: #{tpu_custom_call.1} parent=1 // pred_region
      %vm26 = vcmask 138240
      %27 = vst.msk [vmem:[#allocation2] sm:$0xff] %vm26, 0.0
    $region25: #{tpu_custom_call.1} parent=1 // pred_fallthru
      _
    %v28 = vld [vmem:[%s0] sm:$0xf]
    %v29 = vld [vmem:[%s1] sm:$0xff]
    %v30 = vld [vmem:[%s1 + $0x8] sm:$0xff]
    %v31 = vld [vmem:[%s1 + $0x10] sm:$0xff]
    %v32 = vld [vmem:[%s1 + $0x18] sm:$0xff]
    %v33 = vld [vmem:[%s1 + $0x20] sm:$0xff]
    %v34 = vld [vmem:[%s1 + $0x28] sm:$0xff]
    %v35 = vld [vmem:[%s1 + $0x30] sm:$0xff]
    %v36 = vld [vmem:[%s1 + $0x38] sm:$0xff]
    %v37 = vld [vmem:[%s1 + $0x40] sm:$0xff]
    %v38 = vld [vmem:[%s1 + $0x48] sm:$0xff]
    %v39 = vld [vmem:[%s1 + $0x50] sm:$0xff]
    %v40 = vld [vmem:[%s1 + $0x58] sm:$0xff]
    %v41 = vld [vmem:[%s1 + $0x60] sm:$0xff]
    %v42 = vld [vmem:[%s1 + $0x68] sm:$0xff]
    %v43 = vld [vmem:[%s1 + $0x70] sm:$0xff]
    %v44 = vld [vmem:[%s1 + $0x78] sm:$0xff]
    %v45 = vld [vmem:[%s1 + $0x80] sm:$0xff]
    %v46 = vld [vmem:[%s1 + $0x88] sm:$0xff]
    %v47 = vld [vmem:[%s1 + $0x90] sm:$0xff]
    %v48 = vld [vmem:[%s1 + $0x98] sm:$0xff]
    %v49 = vld [vmem:[%s1 + $0xa0] sm:$0xff]
    %v50 = vld [vmem:[%s1 + $0xa8] sm:$0xff]
    %v51 = vld [vmem:[%s1 + $0xb0] sm:$0xff]
    %v52 = vld [vmem:[%s1 + $0xb8] sm:$0xff]
    %v53 = vld [vmem:[%s1 + $0xc0] sm:$0xff]
    %v54 = vld [vmem:[%s1 + $0xc8] sm:$0xff]
    %v55 = vld [vmem:[%s1 + $0xd0] sm:$0xff]
    %v56 = vld [vmem:[%s1 + $0xd8] sm:$0xff]
    %v57 = vld [vmem:[%s1 + $0xe0] sm:$0xff]
    %v58 = vld [vmem:[%s1 + $0xe8] sm:$0xff]
    %v59 = vld [vmem:[%s1 + $0xf0] sm:$0xff]
    %v60 = vld [vmem:[%s1 + $0xf8] sm:$0xff]
    %v93 = vunpack.c.l.b16 %v29
    %v94 = vunpack.c.h.b16 %v29
    %v95 = vunpack.c.l.b16 %v30
    %v96 = vunpack.c.h.b16 %v30
    %v97 = vunpack.c.l.b16 %v31
    %v98 = vunpack.c.h.b16 %v31
    %v99 = vunpack.c.l.b16 %v32
    %v100 = vunpack.c.h.b16 %v32
    %v101 = vunpack.c.l.b16 %v33
    %v102 = vunpack.c.h.b16 %v33
    %v103 = vunpack.c.l.b16 %v34
    %v104 = vunpack.c.h.b16 %v34
    %v105 = vunpack.c.l.b16 %v35
    %v106 = vunpack.c.h.b16 %v35
    %v107 = vunpack.c.l.b16 %v36
    %v108 = vunpack.c.h.b16 %v36
    %v109 = vunpack.c.l.b16 %v37
    %v110 = vunpack.c.h.b16 %v37
    %v111 = vunpack.c.l.b16 %v38
    %v112 = vunpack.c.h.b16 %v38
    %v113 = vunpack.c.l.b16 %v39
    %v114 = vunpack.c.h.b16 %v39
    %v115 = vunpack.c.l.b16 %v40
    %v116 = vunpack.c.h.b16 %v40
    %v117 = vunpack.c.l.b16 %v41
    %v118 = vunpack.c.h.b16 %v41
    %v119 = vunpack.c.l.b16 %v42
    %v120 = vunpack.c.h.b16 %v42
    %v121 = vunpack.c.l.b16 %v43
    %v122 = vunpack.c.h.b16 %v43
    %v123 = vunpack.c.l.b16 %v44
    %v124 = vunpack.c.h.b16 %v44
    %v125 = vunpack.c.l.b16 %v45
    %v126 = vunpack.c.h.b16 %v45
    %v127 = vunpack.c.l.b16 %v46
    %v128 = vunpack.c.h.b16 %v46
    %v129 = vunpack.c.l.b16 %v47
    %v130 = vunpack.c.h.b16 %v47
    %v131 = vunpack.c.l.b16 %v48
    %v132 = vunpack.c.h.b16 %v48
    %v133 = vunpack.c.l.b16 %v49
    %v134 = vunpack.c.h.b16 %v49
    %v135 = vunpack.c.l.b16 %v50
    %v136 = vunpack.c.h.b16 %v50
    %v137 = vunpack.c.l.b16 %v51
    %v138 = vunpack.c.h.b16 %v51
    %v139 = vunpack.c.l.b16 %v52
    %v140 = vunpack.c.h.b16 %v52
    %v141 = vunpack.c.l.b16 %v53
    %v142 = vunpack.c.h.b16 %v53
    %v143 = vunpack.c.l.b16 %v54
    %v144 = vunpack.c.h.b16 %v54
    %v145 = vunpack.c.l.b16 %v55
    %v146 = vunpack.c.h.b16 %v55
    %v147 = vunpack.c.l.b16 %v56
    %v148 = vunpack.c.h.b16 %v56
    %v149 = vunpack.c.l.b16 %v57
    %v150 = vunpack.c.h.b16 %v57
    %v151 = vunpack.c.l.b16 %v58
    %v152 = vunpack.c.h.b16 %v58
    %v153 = vunpack.c.l.b16 %v59
    %v154 = vunpack.c.h.b16 %v59
    %v155 = vunpack.c.l.b16 %v60
    %v156 = vunpack.c.h.b16 %v60
    %v157 = vpack.c.b16 %v101, %v93
    %v158 = vpack.c.b16 %v102, %v94
    %v159 = vpack.c.b16 %v103, %v95
    %v160 = vpack.c.b16 %v104, %v96
    %v161 = vpack.c.b16 %v105, %v97
    %v162 = vpack.c.b16 %v106, %v98
    %v163 = vpack.c.b16 %v107, %v99
    %v164 = vpack.c.b16 %v108, %v100
    %v165 = vpack.c.b16 %v117, %v109
    %v166 = vpack.c.b16 %v118, %v110
    %v167 = vpack.c.b16 %v119, %v111
    %v168 = vpack.c.b16 %v120, %v112
    %v169 = vpack.c.b16 %v121, %v113
    %v170 = vpack.c.b16 %v122, %v114
    %v171 = vpack.c.b16 %v123, %v115
    %v172 = vpack.c.b16 %v124, %v116
    %v173 = vpack.c.b16 %v133, %v125
    %v174 = vpack.c.b16 %v134, %v126
    %v175 = vpack.c.b16 %v135, %v127
    %v176 = vpack.c.b16 %v136, %v128
    %v177 = vpack.c.b16 %v137, %v129
    %v178 = vpack.c.b16 %v138, %v130
    %v179 = vpack.c.b16 %v139, %v131
    %v180 = vpack.c.b16 %v140, %v132
    %v181 = vpack.c.b16 %v149, %v141
    %v182 = vpack.c.b16 %v150, %v142
    %v183 = vpack.c.b16 %v151, %v143
    %v184 = vpack.c.b16 %v152, %v144
    %v185 = vpack.c.b16 %v153, %v145
    %v186 = vpack.c.b16 %v154, %v146
    %v187 = vpack.c.b16 %v155, %v147
    %v188 = vpack.c.b16 %v156, %v148
    %vm221 = vcmask 523264
    %v223 = vsel %vm221, %v28, 0
    %225 = vmatprep.subr.bf16.mxu0 %v158
    %226 = vmatpush1.bf16.msra.mxu0 %v157
    %227 = vmatprep.subr.bf16.mxu0 %v166
    %228 = vmatpush1.bf16.msra.mxu0 %v165
    %229 = vmatprep.subr.bf16.mxu0 %v174
    %230 = vmatpush1.bf16.msra.mxu0 %v173
    %231 = vmatprep.subr.bf16.mxu0 %v182
    %232 = vmatpush1.bf16.msra.mxu0 %v181
    %233 = vmatprep.subr.bf16.mxu0 0
    %234 = vmatpush1.bf16.msra.mxu0 0
    %235 = vmatprep.subr.bf16.mxu0 0
    %236 = vmatpush1.bf16.msra.mxu0 0
    %237 = vmatprep.subr.bf16.mxu0 0
    %238 = vmatpush1.bf16.msra.mxu0 0
    %239 = vmatprep.subr.bf16.mxu0 0
    %240 = vmatpush1.bf16.msra.mxu0 0
    %241 = vmatprep.subr.bf16.mxu0 0
    %242 = vmatpush1.bf16.msra.mxu0 0
    %243 = vmatprep.subr.bf16.mxu0 0
    %244 = vmatpush1.bf16.msra.mxu0 0
    %245 = vmatprep.subr.bf16.mxu0 0
    %246 = vmatpush1.bf16.msra.mxu0 0
    %247 = vmatprep.subr.bf16.mxu0 0
    %248 = vmatpush1.bf16.msra.mxu0 0
    %249 = vmatprep.subr.bf16.mxu0 0
    %250 = vmatpush1.bf16.msra.mxu0 0
    %251 = vmatprep.subr.bf16.mxu0 0
    %252 = vmatpush1.bf16.msra.mxu0 0
    %253 = vmatprep.subr.bf16.mxu0 0
    %254 = vmatpush1.bf16.msra.mxu0 0
    %255 = vmatprep.subr.bf16.mxu0 0
    %256 = vmatpush1.bf16.msra.mxu0 0
    %257 = vmatprep.mubr.bf16.mxu0 0
    %258 = vmatmul.mubr.bf16.gmra.mrb[0].mxu0 %v223
    %v259 = vpop.f32.mrb[0].mxu0
    %v260 = vadd.f32 0.0, %v259
    %v261 = vpop.f32.mrb[0].mxu0
    %v262 = vadd.f32 0.0, %v261
    %v263 = vpop.f32.mrb[0].mxu0
    %v264 = vpop.f32.mrb[0].mxu0
    %265 = vdwg.mxu0
    %266 = vmatprep.subr.bf16.mxu0 %v160
    %267 = vmatpush1.bf16.msra.mxu0 %v159
    %268 = vmatprep.subr.bf16.mxu0 %v168
    %269 = vmatpush1.bf16.msra.mxu0 %v167
    %270 = vmatprep.subr.bf16.mxu0 %v176
    %271 = vmatpush1.bf16.msra.mxu0 %v175
    %272 = vmatprep.subr.bf16.mxu0 %v184
    %273 = vmatpush1.bf16.msra.mxu0 %v183
    %274 = vmatprep.subr.bf16.mxu0 0
    %275 = vmatpush1.bf16.msra.mxu0 0
    %276 = vmatprep.subr.bf16.mxu0 0
    %277 = vmatpush1.bf16.msra.mxu0 0
    %278 = vmatprep.subr.bf16.mxu0 0
    %279 = vmatpush1.bf16.msra.mxu0 0
    %280 = vmatprep.subr.bf16.mxu0 0
    %281 = vmatpush1.bf16.msra.mxu0 0
    %282 = vmatprep.subr.bf16.mxu0 0
    %283 = vmatpush1.bf16.msra.mxu0 0
    %284 = vmatprep.subr.bf16.mxu0 0
    %285 = vmatpush1.bf16.msra.mxu0 0
    %286 = vmatprep.subr.bf16.mxu0 0
    %287 = vmatpush1.bf16.msra.mxu0 0
    %288 = vmatprep.subr.bf16.mxu0 0
    %289 = vmatpush1.bf16.msra.mxu0 0
    %290 = vmatprep.subr.bf16.mxu0 0
    %291 = vmatpush1.bf16.msra.mxu0 0
    %292 = vmatprep.subr.bf16.mxu0 0
    %293 = vmatpush1.bf16.msra.mxu0 0
    %294 = vmatprep.subr.bf16.mxu0 0
    %295 = vmatpush1.bf16.msra.mxu0 0
    %296 = vmatprep.subr.bf16.mxu0 0
    %297 = vmatpush1.bf16.msra.mxu0 0
    %298 = vmatprep.mubr.bf16.mxu0 0
    %299 = vmatmul.mubr.bf16.gmra.mrb[0].mxu0 %v223
    %v300 = vpop.f32.mrb[0].mxu0
    %v301 = vadd.f32 0.0, %v300
    %v302 = vpop.f32.mrb[0].mxu0
    %v303 = vadd.f32 0.0, %v302
    %v304 = vpop.f32.mrb[0].mxu0
    %v305 = vpop.f32.mrb[0].mxu0
    %306 = vdwg.mxu0
    %307 = vmatprep.subr.bf16.mxu0 %v162
    %308 = vmatpush1.bf16.msra.mxu0 %v161
    %309 = vmatprep.subr.bf16.mxu0 %v170
    %310 = vmatpush1.bf16.msra.mxu0 %v169
    %311 = vmatprep.subr.bf16.mxu0 %v178
    %312 = vmatpush1.bf16.msra.mxu0 %v177
    %313 = vmatprep.subr.bf16.mxu0 %v186
    %314 = vmatpush1.bf16.msra.mxu0 %v185
    %315 = vmatprep.subr.bf16.mxu0 0
    %316 = vmatpush1.bf16.msra.mxu0 0
    %317 = vmatprep.subr.bf16.mxu0 0
    %318 = vmatpush1.bf16.msra.mxu0 0
    %319 = vmatprep.subr.bf16.mxu0 0
    %320 = vmatpush1.bf16.msra.mxu0 0
    %321 = vmatprep.subr.bf16.mxu0 0
    %322 = vmatpush1.bf16.msra.mxu0 0
    %323 = vmatprep.subr.bf16.mxu0 0
    %324 = vmatpush1.bf16.msra.mxu0 0
    %325 = vmatprep.subr.bf16.mxu0 0
    %326 = vmatpush1.bf16.msra.mxu0 0
    %327 = vmatprep.subr.bf16.mxu0 0
    %328 = vmatpush1.bf16.msra.mxu0 0
    %329 = vmatprep.subr.bf16.mxu0 0
    %330 = vmatpush1.bf16.msra.mxu0 0
    %331 = vmatprep.subr.bf16.mxu0 0
    %332 = vmatpush1.bf16.msra.mxu0 0
    %333 = vmatprep.subr.bf16.mxu0 0
    %334 = vmatpush1.bf16.msra.mxu0 0
    %335 = vmatprep.subr.bf16.mxu0 0
    %336 = vmatpush1.bf16.msra.mxu0 0
    %337 = vmatprep.subr.bf16.mxu0 0
    %338 = vmatpush1.bf16.msra.mxu0 0
    %339 = vmatprep.mubr.bf16.mxu0 0
    %340 = vmatmul.mubr.bf16.gmra.mrb[0].mxu0 %v223
    %v341 = vpop.f32.mrb[0].mxu0
    %v342 = vadd.f32 0.0, %v341
    %v343 = vpop.f32.mrb[0].mxu0
    %v344 = vadd.f32 0.0, %v343
    %v345 = vpop.f32.mrb[0].mxu0
    %v346 = vpop.f32.mrb[0].mxu0
    %347 = vdwg.mxu0
    %348 = vmatprep.subr.bf16.mxu0 %v164
    %349 = vmatpush1.bf16.msra.mxu0 %v163
    %350 = vmatprep.subr.bf16.mxu0 %v172
    %351 = vmatpush1.bf16.msra.mxu0 %v171
    %352 = vmatprep.subr.bf16.mxu0 %v180
    %353 = vmatpush1.bf16.msra.mxu0 %v179
    %354 = vmatprep.subr.bf16.mxu0 %v188
    %355 = vmatpush1.bf16.msra.mxu0 %v187
    %356 = vmatprep.subr.bf16.mxu0 0
    %357 = vmatpush1.bf16.msra.mxu0 0
    %358 = vmatprep.subr.bf16.mxu0 0
    %359 = vmatpush1.bf16.msra.mxu0 0
    %360 = vmatprep.subr.bf16.mxu0 0
    %361 = vmatpush1.bf16.msra.mxu0 0
    %362 = vmatprep.subr.bf16.mxu0 0
    %363 = vmatpush1.bf16.msra.mxu0 0
    %364 = vmatprep.subr.bf16.mxu0 0
    %365 = vmatpush1.bf16.msra.mxu0 0
    %366 = vmatprep.subr.bf16.mxu0 0
    %367 = vmatpush1.bf16.msra.mxu0 0
    %368 = vmatprep.subr.bf16.mxu0 0
    %369 = vmatpush1.bf16.msra.mxu0 0
    %370 = vmatprep.subr.bf16.mxu0 0
    %371 = vmatpush1.bf16.msra.mxu0 0
    %372 = vmatprep.subr.bf16.mxu0 0
    %373 = vmatpush1.bf16.msra.mxu0 0
    %374 = vmatprep.subr.bf16.mxu0 0
    %375 = vmatpush1.bf16.msra.mxu0 0
    %376 = vmatprep.subr.bf16.mxu0 0
    %377 = vmatpush1.bf16.msra.mxu0 0
    %378 = vmatprep.subr.bf16.mxu0 0
    %379 = vmatpush1.bf16.msra.mxu0 0
    %380 = vmatprep.mubr.bf16.mxu0 0
    %381 = vmatmul.mubr.bf16.gmra.mrb[0].mxu0 %v223
    %v382 = vpop.f32.mrb[0].mxu0
    %v383 = vadd.f32 0.0, %v382
    %v384 = vpop.f32.mrb[0].mxu0
    %v385 = vadd.f32 0.0, %v384
    %v386 = vpop.f32.mrb[0].mxu0
    %v387 = vpop.f32.mrb[0].mxu0
    %388 = vdwg.mxu0
    %vm389 = vcmp.eq.f32.partialorder %v260, 2.0
    %vm390 = vcmp.eq.f32.partialorder %v262, 2.0
    %vm391 = vcmp.eq.f32.partialorder %v301, 2.0
    %vm392 = vcmp.eq.f32.partialorder %v303, 2.0
    %vm393 = vcmp.eq.f32.partialorder %v342, 2.0
    %vm394 = vcmp.eq.f32.partialorder %v344, 2.0
    %vm395 = vcmp.eq.f32.partialorder %v383, 2.0
    %vm396 = vcmp.eq.f32.partialorder %v385, 2.0
    %v397 = vld [vmem:[%s2] sm:$0xff]
    %v398 = vld [vmem:[%s2 + $0x8] sm:$0xff]
    %v399 = vld [vmem:[%s2 + $0x10] sm:$0xff]
    %v400 = vld [vmem:[%s2 + $0x18] sm:$0xff]
    %v401 = vld [vmem:[%s2 + $0x20] sm:$0xff]
    %v402 = vld [vmem:[%s2 + $0x28] sm:$0xff]
    %v403 = vld [vmem:[%s2 + $0x30] sm:$0xff]
    %v404 = vld [vmem:[%s2 + $0x38] sm:$0xff]
    %v405 = vld [vmem:[%s2 + $0x40] sm:$0xff]
    %v406 = vld [vmem:[%s2 + $0x48] sm:$0xff]
    %v407 = vld [vmem:[%s2 + $0x50] sm:$0xff]
    %v408 = vld [vmem:[%s2 + $0x58] sm:$0xff]
    %v409 = vld [vmem:[%s2 + $0x60] sm:$0xff]
    %v410 = vld [vmem:[%s2 + $0x68] sm:$0xff]
    %v411 = vld [vmem:[%s2 + $0x70] sm:$0xff]
    %v412 = vld [vmem:[%s2 + $0x78] sm:$0xff]
    %v413 = vld [vmem:[%s2 + $0x80] sm:$0xff]
    %v414 = vld [vmem:[%s2 + $0x88] sm:$0xff]
    %v415 = vld [vmem:[%s2 + $0x90] sm:$0xff]
    %v416 = vld [vmem:[%s2 + $0x98] sm:$0xff]
    %v417 = vld [vmem:[%s2 + $0xa0] sm:$0xff]
    %v418 = vld [vmem:[%s2 + $0xa8] sm:$0xff]
    %v419 = vld [vmem:[%s2 + $0xb0] sm:$0xff]
    %v420 = vld [vmem:[%s2 + $0xb8] sm:$0xff]
    %v421 = vld [vmem:[%s2 + $0xc0] sm:$0xff]
    %v422 = vld [vmem:[%s2 + $0xc8] sm:$0xff]
    %v423 = vld [vmem:[%s2 + $0xd0] sm:$0xff]
    %v424 = vld [vmem:[%s2 + $0xd8] sm:$0xff]
    %v425 = vld [vmem:[%s2 + $0xe0] sm:$0xff]
    %v426 = vld [vmem:[%s2 + $0xe8] sm:$0xff]
    %v427 = vld [vmem:[%s2 + $0xf0] sm:$0xff]
    %v428 = vld [vmem:[%s2 + $0xf8] sm:$0xff]
    %v429 = vld [vmem:[%s2 + $0x100] sm:$0xff]
    %v430 = vld [vmem:[%s2 + $0x108] sm:$0xff]
    %v431 = vld [vmem:[%s2 + $0x110] sm:$0xff]
    %v432 = vld [vmem:[%s2 + $0x118] sm:$0xff]
    %v433 = vld [vmem:[%s2 + $0x120] sm:$0xff]
    %v434 = vld [vmem:[%s2 + $0x128] sm:$0xff]
    %v435 = vld [vmem:[%s2 + $0x130] sm:$0xff]
    %v436 = vld [vmem:[%s2 + $0x138] sm:$0xff]
    %v437 = vld [vmem:[%s2 + $0x140] sm:$0xff]
    %v438 = vld [vmem:[%s2 + $0x148] sm:$0xff]
    %v439 = vld [vmem:[%s2 + $0x150] sm:$0xff]
    %v440 = vld [vmem:[%s2 + $0x158] sm:$0xff]
    %v441 = vld [vmem:[%s2 + $0x160] sm:$0xff]
    %v442 = vld [vmem:[%s2 + $0x168] sm:$0xff]
    %v443 = vld [vmem:[%s2 + $0x170] sm:$0xff]
    %v444 = vld [vmem:[%s2 + $0x178] sm:$0xff]
    %v445 = vld [vmem:[%s2 + $0x180] sm:$0xff]
    %v446 = vld [vmem:[%s2 + $0x188] sm:$0xff]
    %v447 = vld [vmem:[%s2 + $0x190] sm:$0xff]
    %v448 = vld [vmem:[%s2 + $0x198] sm:$0xff]
    %v449 = vld [vmem:[%s2 + $0x1a0] sm:$0xff]
    %v450 = vld [vmem:[%s2 + $0x1a8] sm:$0xff]
    %v451 = vld [vmem:[%s2 + $0x1b0] sm:$0xff]
    %v452 = vld [vmem:[%s2 + $0x1b8] sm:$0xff]
    %v453 = vld [vmem:[%s2 + $0x1c0] sm:$0xff]
    %v454 = vld [vmem:[%s2 + $0x1c8] sm:$0xff]
    %v455 = vld [vmem:[%s2 + $0x1d0] sm:$0xff]
    %v456 = vld [vmem:[%s2 + $0x1d8] sm:$0xff]
    %v457 = vld [vmem:[%s2 + $0x1e0] sm:$0xff]
    %v458 = vld [vmem:[%s2 + $0x1e8] sm:$0xff]
    %v459 = vld [vmem:[%s2 + $0x1f0] sm:$0xff]
    %v460 = vld [vmem:[%s2 + $0x1f8] sm:$0xff]
    %v461 = vld [vmem:[%s2 + $0x200] sm:$0xff]
    %v462 = vld [vmem:[%s2 + $0x208] sm:$0xff]
    %v463 = vld [vmem:[%s2 + $0x210] sm:$0xff]
    %v464 = vld [vmem:[%s2 + $0x218] sm:$0xff]
    %v465 = vld [vmem:[%s2 + $0x220] sm:$0xff]
    %v466 = vld [vmem:[%s2 + $0x228] sm:$0xff]
    %v467 = vld [vmem:[%s2 + $0x230] sm:$0xff]
    %v468 = vld [vmem:[%s2 + $0x238] sm:$0xff]
    %v469 = vld [vmem:[%s2 + $0x240] sm:$0xff]
    %v470 = vld [vmem:[%s2 + $0x248] sm:$0xff]
    %v471 = vld [vmem:[%s2 + $0x250] sm:$0xff]
    %v472 = vld [vmem:[%s2 + $0x258] sm:$0xff]
    %v473 = vld [vmem:[%s2 + $0x260] sm:$0xff]
    %v474 = vld [vmem:[%s2 + $0x268] sm:$0xff]
    %v475 = vld [vmem:[%s2 + $0x270] sm:$0xff]
    %v476 = vld [vmem:[%s2 + $0x278] sm:$0xff]
    %v477 = vld [vmem:[%s2 + $0x280] sm:$0xff]
    %v478 = vld [vmem:[%s2 + $0x288] sm:$0xff]
    %v479 = vld [vmem:[%s2 + $0x290] sm:$0xff]
    %v480 = vld [vmem:[%s2 + $0x298] sm:$0xff]
    %v481 = vld [vmem:[%s2 + $0x2a0] sm:$0xff]
    %v482 = vld [vmem:[%s2 + $0x2a8] sm:$0xff]
    %v483 = vld [vmem:[%s2 + $0x2b0] sm:$0xff]
    %v484 = vld [vmem:[%s2 + $0x2b8] sm:$0xff]
    %v485 = vld [vmem:[%s2 + $0x2c0] sm:$0xff]
    %v486 = vld [vmem:[%s2 + $0x2c8] sm:$0xff]
    %v487 = vld [vmem:[%s2 + $0x2d0] sm:$0xff]
    %v488 = vld [vmem:[%s2 + $0x2d8] sm:$0xff]
    %v489 = vld [vmem:[%s2 + $0x2e0] sm:$0xff]
    %v490 = vld [vmem:[%s2 + $0x2e8] sm:$0xff]
    %v491 = vld [vmem:[%s2 + $0x2f0] sm:$0xff]
    %v492 = vld [vmem:[%s2 + $0x2f8] sm:$0xff]
    %v493 = vld [vmem:[%s2 + $0x300] sm:$0xff]
    %v494 = vld [vmem:[%s2 + $0x308] sm:$0xff]
    %v495 = vld [vmem:[%s2 + $0x310] sm:$0xff]
    %v496 = vld [vmem:[%s2 + $0x318] sm:$0xff]
    %v497 = vld [vmem:[%s2 + $0x320] sm:$0xff]
    %v498 = vld [vmem:[%s2 + $0x328] sm:$0xff]
    %v499 = vld [vmem:[%s2 + $0x330] sm:$0xff]
    %v500 = vld [vmem:[%s2 + $0x338] sm:$0xff]
    %v501 = vld [vmem:[%s2 + $0x340] sm:$0xff]
    %v502 = vld [vmem:[%s2 + $0x348] sm:$0xff]
    %v503 = vld [vmem:[%s2 + $0x350] sm:$0xff]
    %v504 = vld [vmem:[%s2 + $0x358] sm:$0xff]
    %v505 = vld [vmem:[%s2 + $0x360] sm:$0xff]
    %v506 = vld [vmem:[%s2 + $0x368] sm:$0xff]
    %v507 = vld [vmem:[%s2 + $0x370] sm:$0xff]
    %v508 = vld [vmem:[%s2 + $0x378] sm:$0xff]
    %v509 = vld [vmem:[%s2 + $0x380] sm:$0xff]
    %v510 = vld [vmem:[%s2 + $0x388] sm:$0xff]
    %v511 = vld [vmem:[%s2 + $0x390] sm:$0xff]
    %v512 = vld [vmem:[%s2 + $0x398] sm:$0xff]
    %v513 = vld [vmem:[%s2 + $0x3a0] sm:$0xff]
    %v514 = vld [vmem:[%s2 + $0x3a8] sm:$0xff]
    %v515 = vld [vmem:[%s2 + $0x3b0] sm:$0xff]
    %v516 = vld [vmem:[%s2 + $0x3b8] sm:$0xff]
    %v517 = vld [vmem:[%s2 + $0x3c0] sm:$0xff]
    %v518 = vld [vmem:[%s2 + $0x3c8] sm:$0xff]
    %v519 = vld [vmem:[%s2 + $0x3d0] sm:$0xff]
    %v520 = vld [vmem:[%s2 + $0x3d8] sm:$0xff]
    %v521 = vld [vmem:[%s2 + $0x3e0] sm:$0xff]
    %v522 = vsel %vm389, 1.0, 0.0
    %v523 = vsel %vm390, 1.0, 0.0
    %v524 = vsel %vm391, 1.0, 0.0
    %v525 = vsel %vm392, 1.0, 0.0
    %v526 = vsel %vm393, 1.0, 0.0
    %v527 = vsel %vm394, 1.0, 0.0
    %v528 = vsel %vm395, 1.0, 0.0
    %v529 = vsel %vm396, 1.0, 0.0
    %v530 = vld [vmem:[#allocation2] sm:$0xff]
    %vm531 = vcmask 850944
    %v533 = vsel %vm531, %v529, 0
    %535 = vmatprep.subr.mxu0 0.0
    %536 = vmatpush1.msra.mxu0 %v397
    %537 = vmatprep.subr.mxu0 0.0
    %538 = vmatpush1.msra.mxu0 %v398
    %539 = vmatprep.subr.mxu0 0.0
    %540 = vmatpush1.msra.mxu0 %v399
    %541 = vmatprep.subr.mxu0 0.0
    %542 = vmatpush1.msra.mxu0 %v400
    %543 = vmatprep.subr.mxu0 0.0
    %544 = vmatpush1.msra.mxu0 %v401
    %545 = vmatprep.subr.mxu0 0.0
    %546 = vmatpush1.msra.mxu0 %v402
    %547 = vmatprep.subr.mxu0 0.0
    %548 = vmatpush1.msra.mxu0 %v403
    %549 = vmatprep.subr.mxu0 0.0
    %550 = vmatpush1.msra.mxu0 %v404
    %551 = vmatprep.subr.mxu0 0.0
    %552 = vmatpush1.msra.mxu0 %v405
    %553 = vmatprep.subr.mxu0 0.0
    %554 = vmatpush1.msra.mxu0 %v406
    %555 = vmatprep.subr.mxu0 0.0
    %556 = vmatpush1.msra.mxu0 %v407
    %557 = vmatprep.subr.mxu0 0.0
    %558 = vmatpush1.msra.mxu0 %v408
    %559 = vmatprep.subr.mxu0 0.0
    %560 = vmatpush1.msra.mxu0 %v409
    %561 = vmatprep.subr.mxu0 0.0
    %562 = vmatpush1.msra.mxu0 %v410
    %563 = vmatprep.subr.mxu0 0.0
    %564 = vmatpush1.msra.mxu0 %v411
    %565 = vmatprep.subr.mxu0 0.0
    %566 = vmatpush1.msra.mxu0 %v412
    %567 = vmatprep.subr.mxu0 0.0
    %568 = vmatpush1.msra.mxu0 %v413
    %569 = vmatprep.subr.mxu0 0.0
    %570 = vmatpush1.msra.mxu0 %v414
    %571 = vmatprep.subr.mxu0 0.0
    %572 = vmatpush1.msra.mxu0 %v415
    %573 = vmatprep.subr.mxu0 0.0
    %574 = vmatpush1.msra.mxu0 %v416
    %575 = vmatprep.subr.mxu0 0.0
    %576 = vmatpush1.msra.mxu0 %v417
    %577 = vmatprep.subr.mxu0 0.0
    %578 = vmatpush1.msra.mxu0 %v418
    %579 = vmatprep.subr.mxu0 0.0
    %580 = vmatpush1.msra.mxu0 %v419
    %581 = vmatprep.subr.mxu0 0.0
    %582 = vmatpush1.msra.mxu0 %v420
    %583 = vmatprep.subr.mxu0 0.0
    %584 = vmatpush1.msra.mxu0 %v421
    %585 = vmatprep.subr.mxu0 0.0
    %586 = vmatpush1.msra.mxu0 %v422
    %587 = vmatprep.subr.mxu0 0.0
    %588 = vmatpush1.msra.mxu0 %v423
    %589 = vmatprep.subr.mxu0 0.0
    %590 = vmatpush1.msra.mxu0 %v424
    %591 = vmatprep.subr.mxu0 0.0
    %592 = vmatpush1.msra.mxu0 %v425
    %593 = vmatprep.subr.mxu0 0.0
    %594 = vmatpush1.msra.mxu0 %v426
    %595 = vmatprep.subr.mxu0 0.0
    %596 = vmatpush1.msra.mxu0 %v427
    %597 = vmatprep.subr.mxu0 0.0
    %598 = vmatpush1.msra.mxu0 %v428
    %599 = vmatprep.mubr.f32.mxu0 %v523
    %600 = vmatmul.mubr.f32.gmra.mrb[0].mxu0 %v522
    %v601 = vpop.f32.mrb[0].mxu0
    %v602 = vadd.f32 0.0, %v601
    %v603 = vpop.f32.mrb[0].mxu0
    %604 = vdwg.mxu0
    %605 = vmatprep.subr.mxu0 0.0
    %606 = vmatpush1.msra.mxu0 %v429
    %607 = vmatprep.subr.mxu0 0.0
    %608 = vmatpush1.msra.mxu0 %v430
    %609 = vmatprep.subr.mxu0 0.0
    %610 = vmatpush1.msra.mxu0 %v431
    %611 = vmatprep.subr.mxu0 0.0
    %612 = vmatpush1.msra.mxu0 %v432
    %613 = vmatprep.subr.mxu0 0.0
    %614 = vmatpush1.msra.mxu0 %v433
    %615 = vmatprep.subr.mxu0 0.0
    %616 = vmatpush1.msra.mxu0 %v434
    %617 = vmatprep.subr.mxu0 0.0
    %618 = vmatpush1.msra.mxu0 %v435
    %619 = vmatprep.subr.mxu0 0.0
    %620 = vmatpush1.msra.mxu0 %v436
    %621 = vmatprep.subr.mxu0 0.0
    %622 = vmatpush1.msra.mxu0 %v437
    %623 = vmatprep.subr.mxu0 0.0
    %624 = vmatpush1.msra.mxu0 %v438
    %625 = vmatprep.subr.mxu0 0.0
    %626 = vmatpush1.msra.mxu0 %v439
    %627 = vmatprep.subr.mxu0 0.0
    %628 = vmatpush1.msra.mxu0 %v440
    %629 = vmatprep.subr.mxu0 0.0
    %630 = vmatpush1.msra.mxu0 %v441
    %631 = vmatprep.subr.mxu0 0.0
    %632 = vmatpush1.msra.mxu0 %v442
    %633 = vmatprep.subr.mxu0 0.0
    %634 = vmatpush1.msra.mxu0 %v443
    %635 = vmatprep.subr.mxu0 0.0
    %636 = vmatpush1.msra.mxu0 %v444
    %637 = vmatprep.subr.mxu0 0.0
    %638 = vmatpush1.msra.mxu0 %v445
    %639 = vmatprep.subr.mxu0 0.0
    %640 = vmatpush1.msra.mxu0 %v446
    %641 = vmatprep.subr.mxu0 0.0
    %642 = vmatpush1.msra.mxu0 %v447
    %643 = vmatprep.subr.mxu0 0.0
    %644 = vmatpush1.msra.mxu0 %v448
    %645 = vmatprep.subr.mxu0 0.0
    %646 = vmatpush1.msra.mxu0 %v449
    %647 = vmatprep.subr.mxu0 0.0
    %648 = vmatpush1.msra.mxu0 %v450
    %649 = vmatprep.subr.mxu0 0.0
    %650 = vmatpush1.msra.mxu0 %v451
    %651 = vmatprep.subr.mxu0 0.0
    %652 = vmatpush1.msra.mxu0 %v452
    %653 = vmatprep.subr.mxu0 0.0
    %654 = vmatpush1.msra.mxu0 %v453
    %655 = vmatprep.subr.mxu0 0.0
    %656 = vmatpush1.msra.mxu0 %v454
    %657 = vmatprep.subr.mxu0 0.0
    %658 = vmatpush1.msra.mxu0 %v455
    %659 = vmatprep.subr.mxu0 0.0
    %660 = vmatpush1.msra.mxu0 %v456
    %661 = vmatprep.subr.mxu0 0.0
    %662 = vmatpush1.msra.mxu0 %v457
    %663 = vmatprep.subr.mxu0 0.0
    %664 = vmatpush1.msra.mxu0 %v458
    %665 = vmatprep.subr.mxu0 0.0
    %666 = vmatpush1.msra.mxu0 %v459
    %667 = vmatprep.subr.mxu0 0.0
    %668 = vmatpush1.msra.mxu0 %v460
    %669 = vmatprep.mubr.f32.mxu0 %v525
    %670 = vmatmul.mubr.f32.gmra.mrb[0].mxu0 %v524
    %v671 = vpop.f32.mrb[0].mxu0
    %v672 = vadd.f32 %v602, %v671
    %v673 = vpop.f32.mrb[0].mxu0
    %674 = vdwg.mxu0
    %675 = vmatprep.subr.mxu0 0.0
    %676 = vmatpush1.msra.mxu0 %v461
    %677 = vmatprep.subr.mxu0 0.0
    %678 = vmatpush1.msra.mxu0 %v462
    %679 = vmatprep.subr.mxu0 0.0
    %680 = vmatpush1.msra.mxu0 %v463
    %681 = vmatprep.subr.mxu0 0.0
    %682 = vmatpush1.msra.mxu0 %v464
    %683 = vmatprep.subr.mxu0 0.0
    %684 = vmatpush1.msra.mxu0 %v465
    %685 = vmatprep.subr.mxu0 0.0
    %686 = vmatpush1.msra.mxu0 %v466
    %687 = vmatprep.subr.mxu0 0.0
    %688 = vmatpush1.msra.mxu0 %v467
    %689 = vmatprep.subr.mxu0 0.0
    %690 = vmatpush1.msra.mxu0 %v468
    %691 = vmatprep.subr.mxu0 0.0
    %692 = vmatpush1.msra.mxu0 %v469
    %693 = vmatprep.subr.mxu0 0.0
    %694 = vmatpush1.msra.mxu0 %v470
    %695 = vmatprep.subr.mxu0 0.0
    %696 = vmatpush1.msra.mxu0 %v471
    %697 = vmatprep.subr.mxu0 0.0
    %698 = vmatpush1.msra.mxu0 %v472
    %699 = vmatprep.subr.mxu0 0.0
    %700 = vmatpush1.msra.mxu0 %v473
    %701 = vmatprep.subr.mxu0 0.0
    %702 = vmatpush1.msra.mxu0 %v474
    %703 = vmatprep.subr.mxu0 0.0
    %704 = vmatpush1.msra.mxu0 %v475
    %705 = vmatprep.subr.mxu0 0.0
    %706 = vmatpush1.msra.mxu0 %v476
    %707 = vmatprep.subr.mxu0 0.0
    %708 = vmatpush1.msra.mxu0 %v477
    %709 = vmatprep.subr.mxu0 0.0
    %710 = vmatpush1.msra.mxu0 %v478
    %711 = vmatprep.subr.mxu0 0.0
    %712 = vmatpush1.msra.mxu0 %v479
    %713 = vmatprep.subr.mxu0 0.0
    %714 = vmatpush1.msra.mxu0 %v480
    %715 = vmatprep.subr.mxu0 0.0
    %716 = vmatpush1.msra.mxu0 %v481
    %717 = vmatprep.subr.mxu0 0.0
    %718 = vmatpush1.msra.mxu0 %v482
    %719 = vmatprep.subr.mxu0 0.0
    %720 = vmatpush1.msra.mxu0 %v483
    %721 = vmatprep.subr.mxu0 0.0
    %722 = vmatpush1.msra.mxu0 %v484
    %723 = vmatprep.subr.mxu0 0.0
    %724 = vmatpush1.msra.mxu0 %v485
    %725 = vmatprep.subr.mxu0 0.0
    %726 = vmatpush1.msra.mxu0 %v486
    %727 = vmatprep.subr.mxu0 0.0
    %728 = vmatpush1.msra.mxu0 %v487
    %729 = vmatprep.subr.mxu0 0.0
    %730 = vmatpush1.msra.mxu0 %v488
    %731 = vmatprep.subr.mxu0 0.0
    %732 = vmatpush1.msra.mxu0 %v489
    %733 = vmatprep.subr.mxu0 0.0
    %734 = vmatpush1.msra.mxu0 %v490
    %735 = vmatprep.subr.mxu0 0.0
    %736 = vmatpush1.msra.mxu0 %v491
    %737 = vmatprep.subr.mxu0 0.0
    %738 = vmatpush1.msra.mxu0 %v492
    %739 = vmatprep.mubr.f32.mxu0 %v527
    %740 = vmatmul.mubr.f32.gmra.mrb[0].mxu0 %v526
    %v741 = vpop.f32.mrb[0].mxu0
    %v742 = vadd.f32 %v672, %v741
    %v743 = vpop.f32.mrb[0].mxu0
    %744 = vdwg.mxu0
    %745 = vmatprep.subr.mxu0 0.0
    %746 = vmatpush1.msra.mxu0 %v493
    %747 = vmatprep.subr.mxu0 0.0
    %748 = vmatpush1.msra.mxu0 %v494
    %749 = vmatprep.subr.mxu0 0.0
    %750 = vmatpush1.msra.mxu0 %v495
    %751 = vmatprep.subr.mxu0 0.0
    %752 = vmatpush1.msra.mxu0 %v496
    %753 = vmatprep.subr.mxu0 0.0
    %754 = vmatpush1.msra.mxu0 %v497
    %755 = vmatprep.subr.mxu0 0.0
    %756 = vmatpush1.msra.mxu0 %v498
    %757 = vmatprep.subr.mxu0 0.0
    %758 = vmatpush1.msra.mxu0 %v499
    %759 = vmatprep.subr.mxu0 0.0
    %760 = vmatpush1.msra.mxu0 %v500
    %761 = vmatprep.subr.mxu0 0.0
    %762 = vmatpush1.msra.mxu0 %v501
    %763 = vmatprep.subr.mxu0 0.0
    %764 = vmatpush1.msra.mxu0 %v502
    %765 = vmatprep.subr.mxu0 0.0
    %766 = vmatpush1.msra.mxu0 %v503
    %767 = vmatprep.subr.mxu0 0.0
    %768 = vmatpush1.msra.mxu0 %v504
    %769 = vmatprep.subr.mxu0 0.0
    %770 = vmatpush1.msra.mxu0 %v505
    %771 = vmatprep.subr.mxu0 0.0
    %772 = vmatpush1.msra.mxu0 %v506
    %773 = vmatprep.subr.mxu0 0.0
    %774 = vmatpush1.msra.mxu0 %v507
    %775 = vmatprep.subr.mxu0 0.0
    %776 = vmatpush1.msra.mxu0 %v508
    %777 = vmatprep.subr.mxu0 0.0
    %778 = vmatpush1.msra.mxu0 %v509
    %779 = vmatprep.subr.mxu0 0.0
    %780 = vmatpush1.msra.mxu0 %v510
    %781 = vmatprep.subr.mxu0 0.0
    %782 = vmatpush1.msra.mxu0 %v511
    %783 = vmatprep.subr.mxu0 0.0
    %784 = vmatpush1.msra.mxu0 %v512
    %785 = vmatprep.subr.mxu0 0.0
    %786 = vmatpush1.msra.mxu0 %v513
    %787 = vmatprep.subr.mxu0 0.0
    %788 = vmatpush1.msra.mxu0 %v514
    %789 = vmatprep.subr.mxu0 0.0
    %790 = vmatpush1.msra.mxu0 %v515
    %791 = vmatprep.subr.mxu0 0.0
    %792 = vmatpush1.msra.mxu0 %v516
    %793 = vmatprep.subr.mxu0 0.0
    %794 = vmatpush1.msra.mxu0 %v517
    %795 = vmatprep.subr.mxu0 0.0
    %796 = vmatpush1.msra.mxu0 %v518
    %797 = vmatprep.subr.mxu0 0.0
    %798 = vmatpush1.msra.mxu0 %v519
    %799 = vmatprep.subr.mxu0 0.0
    %800 = vmatpush1.msra.mxu0 %v520
    %801 = vmatprep.subr.mxu0 0.0
    %802 = vmatpush1.msra.mxu0 %v521
    %803 = vmatprep.subr.mxu0 0.0
    %804 = vmatpush1.msra.mxu0 0.0
    %805 = vmatprep.subr.mxu0 0.0
    %806 = vmatpush1.msra.mxu0 0.0
    %807 = vmatprep.subr.mxu0 0.0
    %808 = vmatpush1.msra.mxu0 0.0
    %809 = vmatprep.mubr.f32.mxu0 %v533
    %810 = vmatmul.mubr.f32.gmra.mrb[0].mxu0 %v528
    %v811 = vpop.f32.mrb[0].mxu0
    %v812 = vadd.f32 %v742, %v811
    %v813 = vpop.f32.mrb[0].mxu0
    %814 = vdwg.mxu0
    %v815 = vadd.f32 %v530, %v812
    %vm816 = vcmask 138240
    %817 = vst.msk [vmem:[#allocation2] sm:$0xff] %vm816, %v815
    // Predicated region
    $region26: #{tpu_custom_call.1} parent=1 // pred_check
      %p818 = pneg %p22
    $region27: #{tpu_custom_call.1} parent=1 // pred_check_branch
      %820 = sbr.rel (%p818) target = $region29
    $region28: #{tpu_custom_call.1} parent=1 // pred_region
      %v821 = vld [vmem:[#allocation2] sm:$0xff]
      %vm822 = vcmp.eq.f32.partialorder %v821, 0.0
      %v823 = vrcp.pop %v821
      %v824 = vmul.f32 1.0, %v823
      %v825 = vsel %vm822, 0.0, %v824
      %v826 = vsel %vm822, 0.0, 1.0
      %v827 = vld [vmem:[%s3] sm:$0xff]
      %v828 = vld [vmem:[%s3 + $0x8] sm:$0xff]
      %vm829 = vcmask 130048
      %v831 = vsel %vm829, %v821, 0
      %833 = vmatprep.subr.mxu0 0.0
      %834 = vmatpush1.msra.mxu0 %v827
      %835 = vmatprep.subr.mxu0 0.0
      %836 = vmatpush1.msra.mxu0 %v828
      %837 = vmatprep.subr.mxu0 0.0
      %838 = vmatpush1.msra.mxu0 0.0
      %839 = vmatprep.subr.mxu0 0.0
      %840 = vmatpush1.msra.mxu0 0.0
      %841 = vmatprep.subr.mxu0 0.0
      %842 = vmatpush1.msra.mxu0 0.0
      %843 = vmatprep.subr.mxu0 0.0
      %844 = vmatpush1.msra.mxu0 0.0
      %845 = vmatprep.subr.mxu0 0.0
      %846 = vmatpush1.msra.mxu0 0.0
      %847 = vmatprep.subr.mxu0 0.0
      %848 = vmatpush1.msra.mxu0 0.0
      %849 = vmatprep.subr.mxu0 0.0
      %850 = vmatpush1.msra.mxu0 0.0
      %851 = vmatprep.subr.mxu0 0.0
      %852 = vmatpush1.msra.mxu0 0.0
      %853 = vmatprep.subr.mxu0 0.0
      %854 = vmatpush1.msra.mxu0 0.0
      %855 = vmatprep.subr.mxu0 0.0
      %856 = vmatpush1.msra.mxu0 0.0
      %857 = vmatprep.subr.mxu0 0.0
      %858 = vmatpush1.msra.mxu0 0.0
      %859 = vmatprep.subr.mxu0 0.0
      %860 = vmatpush1.msra.mxu0 0.0
      %861 = vmatprep.subr.mxu0 0.0
      %862 = vmatpush1.msra.mxu0 0.0
      %863 = vmatprep.subr.mxu0 0.0
      %864 = vmatpush1.msra.mxu0 0.0
      %865 = vmatprep.subr.mxu0 0.0
      %866 = vmatpush1.msra.mxu0 0.0
      %867 = vmatprep.subr.mxu0 0.0
      %868 = vmatpush1.msra.mxu0 0.0
      %869 = vmatprep.subr.mxu0 0.0
      %870 = vmatpush1.msra.mxu0 0.0
      %871 = vmatprep.subr.mxu0 0.0
      %872 = vmatpush1.msra.mxu0 0.0
      %873 = vmatprep.subr.mxu0 0.0
      %874 = vmatpush1.msra.mxu0 0.0
      %875 = vmatprep.subr.mxu0 0.0
      %876 = vmatpush1.msra.mxu0 0.0
      %877 = vmatprep.subr.mxu0 0.0
      %878 = vmatpush1.msra.mxu0 0.0
      %879 = vmatprep.subr.mxu0 0.0
      %880 = vmatpush1.msra.mxu0 0.0
      %881 = vmatprep.subr.mxu0 0.0
      %882 = vmatpush1.msra.mxu0 0.0
      %883 = vmatprep.subr.mxu0 0.0
      %884 = vmatpush1.msra.mxu0 0.0
      %885 = vmatprep.subr.mxu0 0.0
      %886 = vmatpush1.msra.mxu0 0.0
      %887 = vmatprep.subr.mxu0 0.0
      %888 = vmatpush1.msra.mxu0 0.0
      %889 = vmatprep.subr.mxu0 0.0
      %890 = vmatpush1.msra.mxu0 0.0
      %891 = vmatprep.subr.mxu0 0.0
      %892 = vmatpush1.msra.mxu0 0.0
      %893 = vmatprep.subr.mxu0 0.0
      %894 = vmatpush1.msra.mxu0 0.0
      %895 = vmatprep.subr.mxu0 0.0
      %896 = vmatpush1.msra.mxu0 0.0
      %897 = vmatprep.mubr.f32.mxu0 0.0
      %898 = vmatmul.mubr.f32.gmra.mrb[0].mxu0 %v831
      %v899 = vpop.f32.mrb[0].mxu0
      %v900 = vadd.f32 0.0, %v899
      %v901 = vpop.f32.mrb[0].mxu0
      %902 = vdwg.mxu0
      %904 = vset.pattern.permute.xlu0 16
      %905 = vperm.xlu0 %904, %v825
      %v906 = vpop.permute.xlu0 %905
      %v908 = vmul.f32 %v906, %v900
      %v909 = vld [vmem:[%s4] sm:$0x1]
      %911 = vset.pattern.permute.xlu0 16
      %912 = vperm.xlu0 %911, %v826
      %v913 = vpop.permute.xlu0 %912
      %v916 = vlaneseq
      %v917 = vshrl.u32 %v916, 7
      %v918 = vsub.s32 0, %v917
      %v919 = vrot.slane %v909, %v918
      %v921 = vmul.f32 %v913, %v919
      %v922 = vadd.f32 %v908, %v921
      %vm923 = vcmask 261120
      %924 = vst.msk [vmem:[#allocation3] sm:$0xff] %vm923, %v922
    $region29: #{tpu_custom_call.1} parent=1 // pred_fallthru
      _
    // Predicated region
    $region30: #{tpu_custom_call.1} parent=1 // pred_check
      _
    $region31: #{tpu_custom_call.1} parent=1 // pred_check_branch
      %926 = sbr.rel (0) target = $region33
    $region32: #{tpu_custom_call.1} parent=1 // pred_region
      %s928 = ssub.s32 128, 128
      %929 = vsyncadd [#allocation4], %s928
      %s931 = sshll.u32 [#allocation3], 4
      %s932 = int_to_ptr.vmem [resolvable:$true] %s931
      %934 = dma.vmem_to_hbm [thread:$0]  %s932, 128, %s5, [#allocation4]
    $region33: #{tpu_custom_call.1} parent=1 // pred_fallthru
      _
    // Predicated region
    $region34: #{tpu_custom_call.1} parent=1 // pred_check
      _
    $region35: #{tpu_custom_call.1} parent=1 // pred_check_branch
      %936 = sbr.rel (0) target = $region37
    $region36: #{tpu_custom_call.1} parent=1 // pred_region
      %937 = dma.done [#allocation4], 128
    $region37: #{tpu_custom_call.1} parent=1 // pred_fallthru
      _
    %938 = vsyncpa [#allocation4], 1

</llo_original>
